<compile_context>
chip_gen: v6e
topology: v6e:2x2x1
jax: 0.10.0
libtpu: 0.0.40
codegen_flags: <defaults>
</compile_context>

<pallas_src>
import numpy as np
import jax
import jax.numpy as jnp
from jax.experimental import pallas as pl
from jax.experimental.pallas import tpu as pltpu


# ----------------------------------------------------------------------------------- #
# Pallas kernel: grid over lane tiles of the (trial*quad-node) axis; accumulating.
# ----------------------------------------------------------------------------------- #
def _pp_gpsde_kernel(CC_ref, Xq_ref, w_ref, Gsp_ref, Xsp_ref,
                     D3_ref, S3_ref, mT_ref, bT_ref,
                     ell_ref, kld_ref, acc_int_ref, acc_kl_ref):
    t = pl.program_id(0)
    nt = pl.num_programs(0)

    @pl.when(t == 0)
    def _():
        acc_int_ref[...] = jnp.zeros_like(acc_int_ref)
        acc_kl_ref[...] = jnp.zeros_like(acc_kl_ref)
        ell_ref[...] = jnp.zeros_like(ell_ref)
        kld_ref[...] = jnp.zeros_like(kld_ref)

    w = w_ref[...]                                                     # (1, T), 0 on padded lanes

    # ------------- ELL integral: log E[lambda] = C m + 0.5 c^T S c + d (one MXU matmul) --------- #
    loglam = jnp.dot(CC_ref[...], Xq_ref[...],
                     preferred_element_type=jnp.float32)               # (N_pad, T)
    lam = jnp.exp(loglam)                                              # EUP; padded rows -> 0
    acc_int_ref[...] += w * jnp.sum(lam, axis=0, keepdims=True)        # one sublane reduce

    # ------------- KL integrand: tr(D S D^T) + ||D m - b||^2 (expanded form) -------------------- #
    D3 = D3_ref[...]                                                   # (K, K, T)   D[i, j, t]
    S3 = S3_ref[...]                                                   # (K, K, T)   S[j, k, t]
    mT = mT_ref[...]                                                   # (K, T)
    bT = bT_ref[...]                                                   # (K, T)
    K = mT.shape[0]

    # G[j,k] = sum_i D[i,j] D[i,k]  (K unrolled VPU FMAs, leading-axis slices are free)
    G = None
    for i in range(K):
        Di = D3[i]                                                     # (K, T)
        term = Di[:, None, :] * Di[None, :, :]                         # (K, K, T)
        G = term if G is None else G + term
    M = S3 + mT[:, None, :] * mT[None, :, :]                           # S + m m^T
    GM = jnp.sum(G * M, axis=0)                                        # (K, T)  leading-axis adds (VPU)
    Db = jnp.sum(D3 * bT[:, None, :], axis=0)                          # (K, T)  D^T b (VPU)
    quad_rows = GM - 2.0 * (mT * Db) + bT * bT                         # (K, T)
    quad = jnp.sum(quad_rows, axis=0, keepdims=True)                   # single sublane reduce
    acc_kl_ref[...] += (0.5 * w) * quad

    # ------------- finalize: spike term + cross-lane reduces only once -------------------------- #
    @pl.when(t == nt - 1)
    def _():
        spike = jnp.sum(Gsp_ref[...] * Xsp_ref[...])                   # sum_spikes C[n].m + d[n]
        ell = spike - jnp.sum(acc_int_ref[...])
        kld = jnp.sum(acc_kl_ref[...])
        ell_ref[...] = jnp.broadcast_to(ell, ell_ref.shape).astype(ell_ref.dtype)
        kld_ref[...] = jnp.broadcast_to(kld, kld_ref.shape).astype(kld_ref.dtype)


# ----------------------------------------------------------------------------------- #
# Wrapper: trial collapse, lane padding, bias folding, gathers (XLA glue) + pallas_call
# ----------------------------------------------------------------------------------- #
def pp_gpsde_forward(m_qu, S_qu, A_qu, b_qu, m_sp, S_sp, spike_id, w, C, d, W,
                     *, lane_tile=1024):
    # S_sp is unused by the exp-link point-process ELL (kept for parity with the torch
    # module's forward(m_sp, S_sp, m_qu, S_qu, A_qu, b_qu)).
    del S_sp
    f32 = jnp.float32
    LANE = 128
    R, Q, _, K = m_qu.shape
    NS = m_sp.shape[1]
    N = C.shape[0]
    RQ, RNS = R * Q, R * NS

    def rup(n, m):
        return ((n + m - 1) // m) * m

    # ---- lane tiling of the quadrature axis (pad to a multiple of the tile) ----
    tile = rup(min(lane_tile, rup(RQ, LANE)), LANE)
    rq_pad = rup(RQ, tile)
    n_tiles = rq_pad // tile
    rns_pad = rup(RNS, LANE)

    # ---- readout packing: bias folded into the matmul, 8-aligned dims ----
    P = K + K * K + 1
    P_pad = rup(P, 8)
    N_pad = rup(N, 8)

    Cf = C.astype(f32)
    Ck = (Cf[:, :, None] * Cf[:, None, :]).reshape(N, K * K)
    CC = jnp.concatenate([Cf, 0.5 * Ck, d.astype(f32).reshape(N, 1)], axis=1)   # (N, P)
    CC = jnp.pad(CC, ((0, N_pad - N), (0, P_pad - P)))
    if N_pad > N:
        # padded neuron rows: large negative bias -> exp underflows to exactly 0
        CC = CC.at[N:, K + K * K].set(-1e4)

    # ---- quadrature-node features, long axis (R*Q, zero-padded) on lanes ----
    mq = m_qu[:, :, 0, :].astype(f32).reshape(RQ, K)
    Sqf = S_qu.astype(f32).reshape(RQ, K * K)
    Xq = jnp.concatenate([mq, Sqf, jnp.ones((RQ, 1), f32)], axis=1)              # (RQ, P)
    Xq = jnp.pad(Xq, ((0, rq_pad - RQ), (0, P_pad - P))).T                       # (P_pad, rq_pad)

    # quadrature weights built from the SAME (R, Q) -> RQ flatten as the node data,
    # zero on padded lanes so they contribute nothing to either integral.
    wrow = jnp.broadcast_to(w.astype(f32)[None, :], (R, Q)).reshape(1, RQ)
    wrow = jnp.pad(wrow, ((0, 0), (0, rq_pad - RQ)))

    Wf = W.astype(f32)
    D3 = (Wf[None, None] + A_qu.astype(f32)).reshape(RQ, K, K)
    D3 = jnp.pad(D3, ((0, rq_pad - RQ), (0, 0), (0, 0))).transpose(1, 2, 0)      # (K, K, rq_pad)
    S3 = jnp.pad(S_qu.astype(f32).reshape(RQ, K, K),
                 ((0, rq_pad - RQ), (0, 0), (0, 0))).transpose(1, 2, 0)          # (K, K, rq_pad)
    mT = jnp.pad(mq, ((0, rq_pad - RQ), (0, 0))).T                               # (K, rq_pad)
    bT = jnp.pad(b_qu[:, :, 0, :].astype(f32).reshape(RQ, K),
                 ((0, rq_pad - RQ), (0, 0))).T                                   # (K, rq_pad)

    # ---- spike-time data: gather readout rows per spike; zero-pad lanes to 128 ----
    # TODO(synk): if the caller pads spikes inside NS, a validity mask must zero those rows.
    msp = m_sp[:, :, 0, :].astype(f32).reshape(RNS, K)
    sid = spike_id.reshape(RNS)
    Gsp = jnp.concatenate([Cf[sid], d.astype(f32)[sid][:, None]], axis=1)        # (RNS, K+1)
    Xsp = jnp.concatenate([msp, jnp.ones((RNS, 1), f32)], axis=1)                # (RNS, K+1)
    Gsp = jnp.pad(Gsp, ((0, rns_pad - RNS), (0, 0))).T                           # (K+1, rns_pad)
    Xsp = jnp.pad(Xsp, ((0, rns_pad - RNS), (0, 0))).T                           # (K+1, rns_pad)

    grid_spec = pltpu.PrefetchScalarGridSpec(
        num_scalar_prefetch=0,
        grid=(n_tiles,),
        in_specs=[
            pl.BlockSpec((N_pad, P_pad), lambda t: (0, 0)),        # CC   (resident)
            pl.BlockSpec((P_pad, tile), lambda t: (0, t)),         # Xq
            pl.BlockSpec((1, tile), lambda t: (0, t)),             # w
            pl.BlockSpec((K + 1, rns_pad), lambda t: (0, 0)),      # Gsp  (resident)
            pl.BlockSpec((K + 1, rns_pad), lambda t: (0, 0)),      # Xsp  (resident)
            pl.BlockSpec((K, K, tile), lambda t: (0, 0, t)),       # D3
            pl.BlockSpec((K, K, tile), lambda t: (0, 0, t)),       # S3
            pl.BlockSpec((K, tile), lambda t: (0, t)),             # mT
            pl.BlockSpec((K, tile), lambda t: (0, t)),             # bT
        ],
        out_specs=(
            pl.BlockSpec((1, 128), lambda t: (0, 0)),
            pl.BlockSpec((1, 128), lambda t: (0, 0)),
        ),
        scratch_shapes=[pltpu.VMEM((1, tile), f32),                # integral accumulator
                        pltpu.VMEM((1, tile), f32)],               # KL accumulator
    )

    # rough VMEM need: double-buffered lane streams + resident blocks + live temporaries
    per_lane = 4 * (P_pad + 1 + 2 * K * K + 2 * K)
    resident = 4 * (N_pad * P_pad + 2 * (K + 1) * rns_pad)
    work = 4 * (3 * N_pad + 4 * K * K + 8) * tile
    est_vmem = 2 * per_lane * tile + resident + work
    # TODO(synk): halve lane_tile on v7x (64 MiB physical VMEM); raise the limit / enlarge
    #             the tile on v5e/v6e to amortize per-grid-step overhead at large R*Q.
    vmem_limit = None if est_vmem < (24 << 20) else int(min(2 * est_vmem, 96 << 20))

    flops = 2 * N_pad * P_pad * rq_pad + (4 * K ** 3 + 10 * K * K) * rq_pad
    bytes_accessed = 4 * (N_pad * P_pad
                          + (P_pad + 1 + 2 * K * K + 2 * K) * rq_pad
                          + 2 * (K + 1) * rns_pad + 2 * 128)
    cost = pl.CostEstimate(flops=int(flops), transcendentals=int(N_pad * rq_pad),
                           bytes_accessed=int(bytes_accessed))

    ell_buf, kld_buf = pl.pallas_call(
        _pp_gpsde_kernel,
        out_shape=(jax.ShapeDtypeStruct((1, 128), f32),
                   jax.ShapeDtypeStruct((1, 128), f32)),
        grid_spec=grid_spec,
        compiler_params=pltpu.CompilerParams(
            dimension_semantics=("arbitrary",),
            vmem_limit_bytes=vmem_limit),
        cost_estimate=cost,
    )(CC, Xq, wrow, Gsp, Xsp, D3, S3, mT, bT)

    ell = ell_buf[0, 0]
    kld = kld_buf[0, 0]
    # log-prior terms depend only on parameters -> plain JAX glue
    prior_trans = -0.5 * jnp.sum(Wf ** 2)
    prior_map = -0.5 * (jnp.sum(Cf ** 2) + jnp.sum(d.astype(f32) ** 2))
    return ell, kld, prior_trans, prior_map


# ----------------------------------------------------------------------------------- #
# Pure-JAX reference for validation
# ----------------------------------------------------------------------------------- #
def reference(m_qu, S_qu, A_qu, b_qu, m_sp, S_sp, spike_id, w, C, d, W):
    del S_sp
    N = C.shape[0]
    mq = m_qu[:, :, 0, :]
    bq = b_qu[:, :, 0, :]
    mu_qu = jnp.einsum('rqk,nk->rqn', mq, C) + d[None, None, :]
    cov_qu = jnp.einsum('rqjk,nj,nk->rqn', S_qu, C, C)
    lam = jnp.exp(mu_qu + 0.5 * cov_qu)
    integral = jnp.einsum('q,rqn->r', w, lam)
    mu_sp = jnp.einsum('rsk,nk->rsn', m_sp[:, :, 0, :], C) + d[None, None, :]
    oh = jax.nn.one_hot(spike_id, N, dtype=mu_sp.dtype)
    spike_term = jnp.sum(oh * mu_sp, axis=(1, 2))
    ell = jnp.sum(spike_term - integral)
    D = W[None, None] + A_qu
    tr = jnp.einsum('rqij,rqjk,rqik->rq', D, S_qu, D)
    r = jnp.einsum('rqij,rqj->rqi', D, mq) - bq
    kld = 0.5 * jnp.sum(w[None, :] * (tr + jnp.sum(r * r, axis=-1)))
    prior_trans = -0.5 * jnp.sum(W ** 2)
    prior_map = -0.5 * (jnp.sum(C ** 2) + jnp.sum(d ** 2))
    return ell, kld, prior_trans, prior_map


if __name__ == "__main__":
    R, Q, K, N, NS = 2, 32, 4, 16, 8   # trials, quad nodes, latents, neurons, spikes/trial
    key = jax.random.PRNGKey(0)
    ks = jax.random.split(key, 10)

    # synthetic inference results (what collectInferenceResults would produce)
    m_qu = 0.5 * jax.random.normal(ks[0], (R, Q, 1, K))
    Lq = 0.2 * jax.random.normal(ks[1], (R, Q, K, K))
    S_qu = jnp.einsum('rqij,rqkj->rqik', Lq, Lq) + 0.05 * jnp.eye(K)
    A_qu = 0.3 * jax.random.normal(ks[2], (R, Q, K, K))
    b_qu = 0.3 * jax.random.normal(ks[3], (R, Q, 1, K))
    m_sp = 0.5 * jax.random.normal(ks[4], (R, NS, 1, K))
    Lsp = 0.2 * jax.random.normal(ks[5], (R, NS, K, K))
    S_sp = jnp.einsum('rsij,rskj->rsik', Lsp, Lsp) + 0.05 * jnp.eye(K)
    spike_id = jax.random.randint(ks[6], (R, NS), 0, N)   # which neuron spiked (like.spikeID)

    # Gauss-Legendre quadrature on [0, trLen]  (KullbackLeibler(nLeg=Q))
    trLen = 1.0
    _, wleg = np.polynomial.legendre.leggauss(Q)
    w = jnp.asarray(0.5 * trLen * wleg, dtype=jnp.float32)

    # deterministic parameters (transfunc drift W, readout C, d)
    C = 0.3 * jax.random.normal(ks[7], (N, K))
    d = -1.0 + 0.1 * jax.random.normal(ks[8], (N,))
    W = 0.2 * jax.random.normal(ks[9], (K, K)) - 0.5 * jnp.eye(K)

    out = pp_gpsde_forward(m_qu, S_qu, A_qu, b_qu, m_sp, S_sp, spike_id, w, C, d, W)
    out = jax.block_until_ready(out)

    ref = reference(m_qu, S_qu, A_qu, b_qu, m_sp, S_sp, spike_id, w, C, d, W)
    np.testing.assert_allclose(np.array(out[0]), np.array(ref[0]), rtol=2e-3, atol=2e-3)
    np.testing.assert_allclose(np.array(out[1]), np.array(ref[1]), rtol=2e-3, atol=2e-3)
    np.testing.assert_allclose(np.array(out[2]), np.array(ref[2]), rtol=2e-3, atol=2e-3)
    np.testing.assert_allclose(np.array(out[3]), np.array(ref[3]), rtol=2e-3, atol=2e-3)

    print("KERNEL_OK")
</pallas_src>

<mosaic_0001>
module attributes {stable_mosaic.version = 11 : i64} {
  func.func @_pp_gpsde_kernel(%arg0: i32, %arg1: memref<16x24xf32, #tpu.memory_space<vmem>>, %arg2: memref<24x128xf32, #tpu.memory_space<vmem>>, %arg3: memref<1x128xf32, #tpu.memory_space<vmem>>, %arg4: memref<5x128xf32, #tpu.memory_space<vmem>>, %arg5: memref<5x128xf32, #tpu.memory_space<vmem>>, %arg6: memref<4x4x128xf32, #tpu.memory_space<vmem>>, %arg7: memref<4x4x128xf32, #tpu.memory_space<vmem>>, %arg8: memref<4x128xf32, #tpu.memory_space<vmem>>, %arg9: memref<4x128xf32, #tpu.memory_space<vmem>>, %arg10: memref<1x128xf32, #tpu.memory_space<vmem>>, %arg11: memref<1x128xf32, #tpu.memory_space<vmem>>, %arg12: memref<1x128xf32, #tpu.memory_space<vmem>>, %arg13: memref<1x128xf32, #tpu.memory_space<vmem>>) attributes {dimension_semantics = [#tpu.dimension_semantics<arbitrary>], iteration_bounds = array<i64: 1>, scalar_prefetch = 0 : i64, scratch_operands = 2 : i64, tpu.core_type = #tpu.core_type<tc>, window_params = [{pipeline_mode = #tpu.pipeline_mode<synchronous>, transform_indices = @transform_0, window_bounds = array<i64: 16, 24>}, {transform_indices = @transform_1, window_bounds = array<i64: 24, 128>}, {transform_indices = @transform_2, window_bounds = array<i64: 1, 128>}, {pipeline_mode = #tpu.pipeline_mode<synchronous>, transform_indices = @transform_3, window_bounds = array<i64: 5, 128>}, {pipeline_mode = #tpu.pipeline_mode<synchronous>, transform_indices = @transform_4, window_bounds = array<i64: 5, 128>}, {transform_indices = @transform_5, window_bounds = array<i64: 4, 4, 128>}, {transform_indices = @transform_6, window_bounds = array<i64: 4, 4, 128>}, {transform_indices = @transform_7, window_bounds = array<i64: 4, 128>}, {transform_indices = @transform_8, window_bounds = array<i64: 4, 128>}, {pipeline_mode = #tpu.pipeline_mode<synchronous>, transform_indices = @transform_9, window_bounds = array<i64: 1, 128>}, {pipeline_mode = #tpu.pipeline_mode<synchronous>, transform_indices = @transform_10, window_bounds = array<i64: 1, 128>}]} {
    %c0_i32 = arith.constant 0 : i32
    %0 = arith.cmpi eq, %arg0, %c0_i32 : i32
    %1 = arith.extui %0 : i1 to i32
    %c0_i32_0 = arith.constant 0 : i32
    %2 = arith.cmpi ne, %1, %c0_i32_0 : i32
    scf.if %2 {
      %cst_32 = arith.constant 0.000000e+00 : f32
      %78 = vector.broadcast %cst_32 : f32 to vector<1x128xf32>
      %c0_33 = arith.constant 0 : index
      %c0_34 = arith.constant 0 : index
      %79 = vector.load %arg12[%c0_33, %c0_34] : memref<1x128xf32, #tpu.memory_space<vmem>>, vector<1x128xf32>
      tpu.vector_store %arg12[%c0_33, %c0_34], %78 {strides = array<i32>} : memref<1x128xf32, #tpu.memory_space<vmem>>, vector<1x128xf32>,
      %cst_35 = arith.constant 0.000000e+00 : f32
      %80 = vector.broadcast %cst_35 : f32 to vector<1x128xf32>
      %c0_36 = arith.constant 0 : index
      %c0_37 = arith.constant 0 : index
      %81 = vector.load %arg13[%c0_36, %c0_37] : memref<1x128xf32, #tpu.memory_space<vmem>>, vector<1x128xf32>
      tpu.vector_store %arg13[%c0_36, %c0_37], %80 {strides = array<i32>} : memref<1x128xf32, #tpu.memory_space<vmem>>, vector<1x128xf32>,
      %cst_38 = arith.constant 0.000000e+00 : f32
      %82 = vector.broadcast %cst_38 : f32 to vector<1x128xf32>
      %c0_39 = arith.constant 0 : index
      %c0_40 = arith.constant 0 : index
      %83 = vector.load %arg10[%c0_39, %c0_40] : memref<1x128xf32, #tpu.memory_space<vmem>>, vector<1x128xf32>
      tpu.vector_store %arg10[%c0_39, %c0_40], %82 {strides = array<i32>} : memref<1x128xf32, #tpu.memory_space<vmem>>, vector<1x128xf32>,
      %cst_41 = arith.constant 0.000000e+00 : f32
      %84 = vector.broadcast %cst_41 : f32 to vector<1x128xf32>
      %c0_42 = arith.constant 0 : index
      %c0_43 = arith.constant 0 : index
      %85 = vector.load %arg11[%c0_42, %c0_43] : memref<1x128xf32, #tpu.memory_space<vmem>>, vector<1x128xf32>
      tpu.vector_store %arg11[%c0_42, %c0_43], %84 {strides = array<i32>} : memref<1x128xf32, #tpu.memory_space<vmem>>, vector<1x128xf32>,
    } else {
    }
    %c0 = arith.constant 0 : index
    %c0_1 = arith.constant 0 : index
    %3 = vector.load %arg3[%c0, %c0_1] : memref<1x128xf32, #tpu.memory_space<vmem>>, vector<1x128xf32>
    %c0_2 = arith.constant 0 : index
    %c0_3 = arith.constant 0 : index
    %4 = vector.load %arg1[%c0_2, %c0_3] : memref<16x24xf32, #tpu.memory_space<vmem>>, vector<16x24xf32>
    %c0_4 = arith.constant 0 : index
    %c0_5 = arith.constant 0 : index
    %5 = vector.load %arg2[%c0_4, %c0_5] : memref<24x128xf32, #tpu.memory_space<vmem>>, vector<24x128xf32>
    %cst = arith.constant dense<0.000000e+00> : vector<16x128xf32>
    %6 = tpu.matmul %4, %5, %cst {dimension_numbers = #tpu.dot_dimension_numbers<[1], [0], [0], [1], [0, 0, 1, 1], [], []>} : vector<16x24xf32>, vector<24x128xf32>, vector<16x128xf32> -> vector<16x128xf32>
    %7 = math.exp %6 : vector<16x128xf32>
    %c0_6 = arith.constant 0 : index
    %c0_7 = arith.constant 0 : index
    %8 = vector.load %arg12[%c0_6, %c0_7] : memref<1x128xf32, #tpu.memory_space<vmem>>, vector<1x128xf32>
    %cst_8 = arith.constant dense<0.000000e+00> : vector<128xf32>
    %9 = vector.multi_reduction <add>, %7, %cst_8 [0] : vector<16x128xf32> to vector<128xf32>
    %10 = vector.shape_cast %9 : vector<128xf32> to vector<1x128xf32>
    %11 = arith.mulf %3, %10 : vector<1x128xf32>
    %12 = arith.addf %8, %11 : vector<1x128xf32>
    %c0_9 = arith.constant 0 : index
    %c0_10 = arith.constant 0 : index
    %13 = vector.load %arg12[%c0_9, %c0_10] : memref<1x128xf32, #tpu.memory_space<vmem>>, vector<1x128xf32>
    tpu.vector_store %arg12[%c0_9, %c0_10], %12 {strides = array<i32>} : memref<1x128xf32, #tpu.memory_space<vmem>>, vector<1x128xf32>,
    %c0_11 = arith.constant 0 : index
    %c0_12 = arith.constant 0 : index
    %c0_13 = arith.constant 0 : index
    %14 = vector.load %arg6[%c0_11, %c0_12, %c0_13] : memref<4x4x128xf32, #tpu.memory_space<vmem>>, vector<4x4x128xf32>
    %c0_14 = arith.constant 0 : index
    %c0_15 = arith.constant 0 : index
    %c0_16 = arith.constant 0 : index
    %15 = vector.load %arg7[%c0_14, %c0_15, %c0_16] : memref<4x4x128xf32, #tpu.memory_space<vmem>>, vector<4x4x128xf32>
    %c0_17 = arith.constant 0 : index
    %c0_18 = arith.constant 0 : index
    %16 = vector.load %arg8[%c0_17, %c0_18] : memref<4x128xf32, #tpu.memory_space<vmem>>, vector<4x128xf32>
    %c0_19 = arith.constant 0 : index
    %c0_20 = arith.constant 0 : index
    %17 = vector.load %arg9[%c0_19, %c0_20] : memref<4x128xf32, #tpu.memory_space<vmem>>, vector<4x128xf32>
    %18 = vector.extract_strided_slice %14 {offsets = [0, 0, 0], sizes = [1, 4, 128], strides = [1, 1, 1]} : vector<4x4x128xf32> to vector<1x4x128xf32>
    %19 = vector.shape_cast %18 : vector<1x4x128xf32> to vector<4x128xf32>
    %20 = vector.shape_cast %19 : vector<4x128xf32> to vector<4x1x128xf32>
    %21 = vector.shape_cast %19 : vector<4x128xf32> to vector<1x4x128xf32>
    %22 = vector.broadcast %20 : vector<4x1x128xf32> to vector<4x4x128xf32>
    %23 = vector.broadcast %21 : vector<1x4x128xf32> to vector<4x4x128xf32>
    %24 = arith.mulf %22, %23 : vector<4x4x128xf32>
    %25 = vector.extract_strided_slice %14 {offsets = [1, 0, 0], sizes = [1, 4, 128], strides = [1, 1, 1]} : vector<4x4x128xf32> to vector<1x4x128xf32>
    %26 = vector.shape_cast %25 : vector<1x4x128xf32> to vector<4x128xf32>
    %27 = vector.shape_cast %26 : vector<4x128xf32> to vector<4x1x128xf32>
    %28 = vector.shape_cast %26 : vector<4x128xf32> to vector<1x4x128xf32>
    %29 = vector.broadcast %27 : vector<4x1x128xf32> to vector<4x4x128xf32>
    %30 = vector.broadcast %28 : vector<1x4x128xf32> to vector<4x4x128xf32>
    %31 = arith.mulf %29, %30 : vector<4x4x128xf32>
    %32 = arith.addf %24, %31 : vector<4x4x128xf32>
    %33 = vector.extract_strided_slice %14 {offsets = [2, 0, 0], sizes = [1, 4, 128], strides = [1, 1, 1]} : vector<4x4x128xf32> to vector<1x4x128xf32>
    %34 = vector.shape_cast %33 : vector<1x4x128xf32> to vector<4x128xf32>
    %35 = vector.shape_cast %34 : vector<4x128xf32> to vector<4x1x128xf32>
    %36 = vector.shape_cast %34 : vector<4x128xf32> to vector<1x4x128xf32>
    %37 = vector.broadcast %35 : vector<4x1x128xf32> to vector<4x4x128xf32>
    %38 = vector.broadcast %36 : vector<1x4x128xf32> to vector<4x4x128xf32>
    %39 = arith.mulf %37, %38 : vector<4x4x128xf32>
    %40 = arith.addf %32, %39 : vector<4x4x128xf32>
    %41 = vector.extract_strided_slice %14 {offsets = [3, 0, 0], sizes = [1, 4, 128], strides = [1, 1, 1]} : vector<4x4x128xf32> to vector<1x4x128xf32>
    %42 = vector.shape_cast %41 : vector<1x4x128xf32> to vector<4x128xf32>
    %43 = vector.shape_cast %42 : vector<4x128xf32> to vector<4x1x128xf32>
    %44 = vector.shape_cast %42 : vector<4x128xf32> to vector<1x4x128xf32>
    %45 = vector.broadcast %43 : vector<4x1x128xf32> to vector<4x4x128xf32>
    %46 = vector.broadcast %44 : vector<1x4x128xf32> to vector<4x4x128xf32>
    %47 = arith.mulf %45, %46 : vector<4x4x128xf32>
    %48 = arith.addf %40, %47 : vector<4x4x128xf32>
    %49 = vector.shape_cast %16 : vector<4x128xf32> to vector<4x1x128xf32>
    %50 = vector.shape_cast %16 : vector<4x128xf32> to vector<1x4x128xf32>
    %51 = vector.broadcast %49 : vector<4x1x128xf32> to vector<4x4x128xf32>
    %52 = vector.broadcast %50 : vector<1x4x128xf32> to vector<4x4x128xf32>
    %53 = arith.mulf %51, %52 : vector<4x4x128xf32>
    %54 = arith.addf %15, %53 : vector<4x4x128xf32>
    %55 = arith.mulf %48, %54 : vector<4x4x128xf32>
    %cst_21 = arith.constant dense<0.000000e+00> : vector<4x128xf32>
    %56 = vector.multi_reduction <add>, %55, %cst_21 [0] : vector<4x4x128xf32> to vector<4x128xf32>
    %57 = vector.shape_cast %17 : vector<4x128xf32> to vector<4x1x128xf32>
    %58 = vector.broadcast %57 : vector<4x1x128xf32> to vector<4x4x128xf32>
    %59 = arith.mulf %14, %58 : vector<4x4x128xf32>
    %cst_22 = arith.constant dense<0.000000e+00> : vector<4x128xf32>
    %60 = vector.multi_reduction <add>, %59, %cst_22 [0] : vector<4x4x128xf32> to vector<4x128xf32>
    %61 = arith.mulf %16, %60 : vector<4x128xf32>
    %cst_23 = arith.constant 2.000000e+00 : f32
    %62 = vector.broadcast %cst_23 : f32 to vector<4x128xf32>
    %63 = arith.mulf %62, %61 : vector<4x128xf32>
    %64 = arith.subf %56, %63 : vector<4x128xf32>
    %65 = arith.mulf %17, %17 : vector<4x128xf32>
    %66 = arith.addf %64, %65 : vector<4x128xf32>
    %cst_24 = arith.constant dense<0.000000e+00> : vector<128xf32>
    %67 = vector.multi_reduction <add>, %66, %cst_24 [0] : vector<4x128xf32> to vector<128xf32>
    %68 = vector.shape_cast %67 : vector<128xf32> to vector<1x128xf32>
    %c0_25 = arith.constant 0 : index
    %c0_26 = arith.constant 0 : index
    %69 = vector.load %arg13[%c0_25, %c0_26] : memref<1x128xf32, #tpu.memory_space<vmem>>, vector<1x128xf32>
    %cst_27 = arith.constant 5.000000e-01 : f32
    %70 = vector.broadcast %cst_27 : f32 to vector<1x128xf32>
    %71 = arith.mulf %70, %3 : vector<1x128xf32>
    %72 = arith.mulf %71, %68 : vector<1x128xf32>
    %73 = arith.addf %69, %72 : vector<1x128xf32>
    %c0_28 = arith.constant 0 : index
    %c0_29 = arith.constant 0 : index
    %74 = vector.load %arg13[%c0_28, %c0_29] : memref<1x128xf32, #tpu.memory_space<vmem>>, vector<1x128xf32>
    tpu.vector_store %arg13[%c0_28, %c0_29], %73 {strides = array<i32>} : memref<1x128xf32, #tpu.memory_space<vmem>>, vector<1x128xf32>,
    %c0_i32_30 = arith.constant 0 : i32
    %75 = arith.cmpi eq, %arg0, %c0_i32_30 : i32
    %76 = arith.extui %75 : i1 to i32
    %c0_i32_31 = arith.constant 0 : i32
    %77 = arith.cmpi ne, %76, %c0_i32_31 : i32
    scf.if %77 {
      %c0_32 = arith.constant 0 : index
      %c0_33 = arith.constant 0 : index
      %78 = vector.load %arg4[%c0_32, %c0_33] : memref<5x128xf32, #tpu.memory_space<vmem>>, vector<5x128xf32>
      %c0_34 = arith.constant 0 : index
      %c0_35 = arith.constant 0 : index
      %79 = vector.load %arg5[%c0_34, %c0_35] : memref<5x128xf32, #tpu.memory_space<vmem>>, vector<5x128xf32>
      %80 = arith.mulf %78, %79 : vector<5x128xf32>
      %81 = vector.shape_cast %80 : vector<5x128xf32> to vector<1x5x128xf32>
      %cst_36 = arith.constant dense<0.000000e+00> : vector<1xf32>
      %82 = vector.multi_reduction <add>, %81, %cst_36 [1, 2] : vector<1x5x128xf32> to vector<1xf32>
      %83 = vector.shape_cast %82 : vector<1xf32> to vector<1x1x1xf32>
      %84 = vector.extract %83[0, 0, 0] : f32 from vector<1x1x1xf32>
      %c0_37 = arith.constant 0 : index
      %c0_38 = arith.constant 0 : index
      %85 = vector.load %arg12[%c0_37, %c0_38] : memref<1x128xf32, #tpu.memory_space<vmem>>, vector<1x128xf32>
      %86 = vector.shape_cast %85 : vector<1x128xf32> to vector<1x1x128xf32>
      %cst_39 = arith.constant dense<0.000000e+00> : vector<1xf32>
      %87 = vector.multi_reduction <add>, %86, %cst_39 [1, 2] : vector<1x1x128xf32> to vector<1xf32>
      %88 = vector.shape_cast %87 : vector<1xf32> to vector<1x1x1xf32>
      %89 = vector.extract %88[0, 0, 0] : f32 from vector<1x1x1xf32>
      %90 = arith.subf %84, %89 : f32
      %c0_40 = arith.constant 0 : index
      %c0_41 = arith.constant 0 : index
      %91 = vector.load %arg13[%c0_40, %c0_41] : memref<1x128xf32, #tpu.memory_space<vmem>>, vector<1x128xf32>
      %92 = vector.shape_cast %91 : vector<1x128xf32> to vector<1x1x128xf32>
      %cst_42 = arith.constant dense<0.000000e+00> : vector<1xf32>
      %93 = vector.multi_reduction <add>, %92, %cst_42 [1, 2] : vector<1x1x128xf32> to vector<1xf32>
      %94 = vector.shape_cast %93 : vector<1xf32> to vector<1x1x1xf32>
      %95 = vector.extract %94[0, 0, 0] : f32 from vector<1x1x1xf32>
      %96 = vector.broadcast %90 : f32 to vector<1x128xf32>
      %c0_43 = arith.constant 0 : index
      %c0_44 = arith.constant 0 : index
      %97 = vector.load %arg10[%c0_43, %c0_44] : memref<1x128xf32, #tpu.memory_space<vmem>>, vector<1x128xf32>
      tpu.vector_store %arg10[%c0_43, %c0_44], %96 {strides = array<i32>} : memref<1x128xf32, #tpu.memory_space<vmem>>, vector<1x128xf32>,
      %98 = vector.broadcast %95 : f32 to vector<1x128xf32>
      %c0_45 = arith.constant 0 : index
      %c0_46 = arith.constant 0 : index
      %99 = vector.load %arg11[%c0_45, %c0_46] : memref<1x128xf32, #tpu.memory_space<vmem>>, vector<1x128xf32>
      tpu.vector_store %arg11[%c0_45, %c0_46], %98 {strides = array<i32>} : memref<1x128xf32, #tpu.memory_space<vmem>>, vector<1x128xf32>,
    } else {
    }
    return
  }
  func.func @transform_0(%arg0: i32) -> (i32, i32) {
    %c0_i32 = arith.constant 0 : i32
    %c0_i32_0 = arith.constant 0 : i32
    %c0_i32_1 = arith.constant 0 : i32
    return %c0_i32, %c0_i32_0 : i32, i32
  }
  func.func @transform_1(%arg0: i32) -> (i32, i32) {
    %c0_i32 = arith.constant 0 : i32
    %c0_i32_0 = arith.constant 0 : i32
    return %c0_i32, %arg0 : i32, i32
  }
  func.func @transform_2(%arg0: i32) -> (i32, i32) {
    %c0_i32 = arith.constant 0 : i32
    %c0_i32_0 = arith.constant 0 : i32
    return %c0_i32, %arg0 : i32, i32
  }
  func.func @transform_3(%arg0: i32) -> (i32, i32) {
    %c0_i32 = arith.constant 0 : i32
    %c0_i32_0 = arith.constant 0 : i32
    %c0_i32_1 = arith.constant 0 : i32
    return %c0_i32, %c0_i32_0 : i32, i32
  }
  func.func @transform_4(%arg0: i32) -> (i32, i32) {
    %c0_i32 = arith.constant 0 : i32
    %c0_i32_0 = arith.constant 0 : i32
    %c0_i32_1 = arith.constant 0 : i32
    return %c0_i32, %c0_i32_0 : i32, i32
  }
  func.func @transform_5(%arg0: i32) -> (i32, i32, i32) {
    %c0_i32 = arith.constant 0 : i32
    %c0_i32_0 = arith.constant 0 : i32
    %c0_i32_1 = arith.constant 0 : i32
    return %c0_i32, %c0_i32_0, %arg0 : i32, i32, i32
  }
  func.func @transform_6(%arg0: i32) -> (i32, i32, i32) {
    %c0_i32 = arith.constant 0 : i32
    %c0_i32_0 = arith.constant 0 : i32
    %c0_i32_1 = arith.constant 0 : i32
    return %c0_i32, %c0_i32_0, %arg0 : i32, i32, i32
  }
  func.func @transform_7(%arg0: i32) -> (i32, i32) {
    %c0_i32 = arith.constant 0 : i32
    %c0_i32_0 = arith.constant 0 : i32
    return %c0_i32, %arg0 : i32, i32
  }
  func.func @transform_8(%arg0: i32) -> (i32, i32) {
    %c0_i32 = arith.constant 0 : i32
    %c0_i32_0 = arith.constant 0 : i32
    return %c0_i32, %arg0 : i32, i32
  }
  func.func @transform_9(%arg0: i32) -> (i32, i32) {
    %c0_i32 = arith.constant 0 : i32
    %c0_i32_0 = arith.constant 0 : i32
    %c0_i32_1 = arith.constant 0 : i32
    return %c0_i32, %c0_i32_0 : i32, i32
  }
  func.func @transform_10(%arg0: i32) -> (i32, i32) {
    %c0_i32 = arith.constant 0 : i32
    %c0_i32_0 = arith.constant 0 : i32
    %c0_i32_1 = arith.constant 0 : i32
    return %c0_i32, %c0_i32_0 : i32, i32
  }
}

</mosaic_0001>

<llo_original>
// kernel: tpu_custom_call.1
$region0: #{tpu_custom_call.1}
  #allocation0 [shape = 'u32[]', space=smem, size = 0x4, offset = 0x4, fixed_abs, tag = 'smem constant byte address 0x4 - core index']
  #allocation1 [shape = 'u32[144,128]{1,0:T(1,128)}', space=vmem, size = 0x12000, scoped, tag = 'internal scratch']
  #allocation2 [shape = 'f32[1,128]{1,0:T(1,128)}', space=vmem, size = 0x200, scoped, tag = 'scratch operand']
  #allocation3 [shape = 'f32[1,128]{1,0:T(1,128)}', space=vmem, size = 0x200, scoped, tag = 'scratch operand']
  %s0 = inlined_call_operand.hbm [shape: f32[16,24], index: 0, kind: input, shape index: {}]
  %s1 = inlined_call_operand.hbm [shape: f32[24,128], index: 1, kind: input, shape index: {}]
  %s2 = inlined_call_operand.vmem [shape: f32[1,128], index: 2, kind: input, shape index: {}]
  %s3 = inlined_call_operand.hbm [shape: f32[5,128], index: 3, kind: input, shape index: {}]
  %s4 = inlined_call_operand.hbm [shape: f32[5,128], index: 4, kind: input, shape index: {}]
  %s5 = inlined_call_operand.hbm [shape: f32[4,4,128], index: 5, kind: input, shape index: {}]
  %s6 = inlined_call_operand.hbm [shape: f32[4,4,128], index: 6, kind: input, shape index: {}]
  %s7 = inlined_call_operand.vmem [shape: f32[4,128], index: 7, kind: input, shape index: {}]
  %s8 = inlined_call_operand.vmem [shape: f32[4,128], index: 8, kind: input, shape index: {}]
  %s9 = inlined_call_operand.hbm [shape: f32[1,128], index: 9, kind: output, shape index: {0}]
  %s10 = inlined_call_operand.hbm [shape: f32[1,128], index: 10, kind: output, shape index: {1}]
  %11 = xla_tuple %s9, %s10
  %s12 = sld [smem:[#allocation0]]
  $region86: #{tpu_custom_call.1} parent=0
    _
  %s14 = ssub.s32 1, %s12
  %s15 = scalar_select 0, %s14, %s12
  $region1: #{tpu_custom_call.1} parent=0
    #allocation4 [shape = 'u8[8192]{0}', space=vmem, size = 0x2000, scoped, tag = 'input window, operand 0, single buffered']
    #allocation5 [shape = 's32[1]{0}', space=sflag, size = 0x4, scoped, tag = 'scoped memory for tpu_custom_call.1']
    #allocation6 [shape = 's32[1]{0}', space=sflag, size = 0x4, scoped, tag = 'scoped memory for tpu_custom_call.1']
    #allocation7 [shape = 'u8[12288]{0}', space=vmem, size = 0x3000, scoped, tag = 'input window, operand 1, single buffered']
    #allocation8 [shape = 's32[1]{0}', space=sflag, size = 0x4, scoped, tag = 'scoped memory for tpu_custom_call.1']
    #allocation9 [shape = 'u8[4096]{0}', space=vmem, size = 0x1000, scoped, tag = 'input window, operand 3, single buffered']
    #allocation10 [shape = 'u8[4096]{0}', space=vmem, size = 0x1000, scoped, tag = 'input window, operand 4, single buffered']
    #allocation11 [shape = 's32[1]{0}', space=sflag, size = 0x4, scoped, tag = 'scoped memory for tpu_custom_call.1']
    #allocation12 [shape = 'u8[8192]{0}', space=vmem, size = 0x2000, scoped, tag = 'input window, operand 5, single buffered']
    #allocation13 [shape = 'u8[8192]{0}', space=vmem, size = 0x2000, scoped, tag = 'input window, operand 6, single buffered']
    #allocation14 [shape = 's32[1]{0}', space=sflag, size = 0x4, scoped, tag = 'scoped memory for tpu_custom_call.1']
    #allocation15 [shape = 'u8[512]{0}', space=vmem, size = 0x400, scoped, tag = 'output window, operand 0, single buffered']
    #allocation16 [shape = 'u8[512]{0}', space=vmem, size = 0x400, scoped, tag = 'output window, operand 1, single buffered']
    #allocation17 [shape = 's32[1]{0}', space=sflag, size = 0x4, scoped, tag = 'scoped memory for tpu_custom_call.1']
    %16 = vsyncpa [#allocation5], 0
    %17 = vsyncpa [#allocation8], 0
    %18 = vsyncpa [#allocation11], 0
    %19 = vsyncpa [#allocation14], 0
    %20 = vsyncpa [#allocation6], 0
    %21 = vsyncpa [#allocation17], 0
    // Predicated region
    $region2: #{tpu_custom_call.1} parent=1 // pred_check
      _
    $region3: #{tpu_custom_call.1} parent=1 // pred_check_branch
      %23 = sbr.rel (0) target = $region5
    $region4: #{tpu_custom_call.1} parent=1 // pred_region
      %s25 = ssub.s32 256, 256
      %26 = vsyncadd [#allocation5], %s25
      %s27 = sshll.u32 [#allocation4], 4
      %s28 = int_to_ptr.vmem [resolvable:$true] %s27
      %33 = dma.hbm_to_vmem [thread:$0]  %s0, 256, %s28, [#allocation5], 128, 128, 8
    $region5: #{tpu_custom_call.1} parent=1 // pred_fallthru
      _
    // Predicated region
    $region6: #{tpu_custom_call.1} parent=1 // pred_check
      _
    $region7: #{tpu_custom_call.1} parent=1 // pred_check_branch
      %35 = sbr.rel (0) target = $region9
    $region8: #{tpu_custom_call.1} parent=1 // pred_region
      %s37 = ssub.s32 384, 384
      %38 = vsyncadd [#allocation8], %s37
      %s39 = sshll.u32 [#allocation7], 4
      %s40 = int_to_ptr.vmem [resolvable:$true] %s39
      %45 = dma.hbm_to_vmem [thread:$0]  %s1, 384, %s40, [#allocation8], 128, 128, 8
    $region9: #{tpu_custom_call.1} parent=1 // pred_fallthru
      _
    // Predicated region
    $region10: #{tpu_custom_call.1} parent=1 // pred_check
      _
    $region11: #{tpu_custom_call.1} parent=1 // pred_check_branch
      %47 = sbr.rel (0) target = $region13
    $region12: #{tpu_custom_call.1} parent=1 // pred_region
      _
    $region13: #{tpu_custom_call.1} parent=1 // pred_fallthru
      _
    // Predicated region
    $region14: #{tpu_custom_call.1} parent=1 // pred_check
      _
    $region15: #{tpu_custom_call.1} parent=1 // pred_check_branch
      %49 = sbr.rel (0) target = $region17
    $region16: #{tpu_custom_call.1} parent=1 // pred_region
      %s51 = ssub.s32 128, 128
      %52 = vsyncadd [#allocation8], %s51
      %s54 = sshll.u32 [#allocation9], 4
      %s55 = int_to_ptr.vmem [resolvable:$true] %s54
      %57 = dma.hbm_to_vmem [thread:$0]  %s3, 128, %s55, [#allocation8]
    $region17: #{tpu_custom_call.1} parent=1 // pred_fallthru
      _
    // Predicated region
    $region18: #{tpu_custom_call.1} parent=1 // pred_check
      _
    $region19: #{tpu_custom_call.1} parent=1 // pred_check_branch
      %59 = sbr.rel (0) target = $region21
    $region20: #{tpu_custom_call.1} parent=1 // pred_region
      %s61 = ssub.s32 128, 128
      %62 = vsyncadd [#allocation11], %s61
      %s64 = sshll.u32 [#allocation10], 4
      %s65 = int_to_ptr.vmem [resolvable:$true] %s64
      %67 = dma.hbm_to_vmem [thread:$0]  %s4, 128, %s65, [#allocation11]
    $region21: #{tpu_custom_call.1} parent=1 // pred_fallthru
      _
    // Predicated region
    $region22: #{tpu_custom_call.1} parent=1 // pred_check
      _
    $region23: #{tpu_custom_call.1} parent=1 // pred_check_branch
      %69 = sbr.rel (0) target = $region25
    $region24: #{tpu_custom_call.1} parent=1 // pred_region
      %s71 = ssub.s32 256, 256
      %72 = vsyncadd [#allocation11], %s71
      %s73 = sshll.u32 [#allocation12], 4
      %s74 = int_to_ptr.vmem [resolvable:$true] %s73
      %79 = dma.hbm_to_vmem [thread:$0]  %s5, 256, %s74, [#allocation11], 64, 64, 4
    $region25: #{tpu_custom_call.1} parent=1 // pred_fallthru
      _
    // Predicated region
    $region26: #{tpu_custom_call.1} parent=1 // pred_check
      _
    $region27: #{tpu_custom_call.1} parent=1 // pred_check_branch
      %81 = sbr.rel (0) target = $region29
    $region28: #{tpu_custom_call.1} parent=1 // pred_region
      %s83 = ssub.s32 256, 256
      %84 = vsyncadd [#allocation14], %s83
      %s85 = sshll.u32 [#allocation13], 4
      %s86 = int_to_ptr.vmem [resolvable:$true] %s85
      %91 = dma.hbm_to_vmem [thread:$0]  %s6, 256, %s86, [#allocation14], 64, 64, 4
    $region29: #{tpu_custom_call.1} parent=1 // pred_fallthru
      _
    // Predicated region
    $region30: #{tpu_custom_call.1} parent=1 // pred_check
      _
    $region31: #{tpu_custom_call.1} parent=1 // pred_check_branch
      %93 = sbr.rel (0) target = $region33
    $region32: #{tpu_custom_call.1} parent=1 // pred_region
      _
    $region33: #{tpu_custom_call.1} parent=1 // pred_fallthru
      _
    // Predicated region
    $region34: #{tpu_custom_call.1} parent=1 // pred_check
      _
    $region35: #{tpu_custom_call.1} parent=1 // pred_check_branch
      %95 = sbr.rel (0) target = $region37
    $region36: #{tpu_custom_call.1} parent=1 // pred_region
      _
    $region37: #{tpu_custom_call.1} parent=1 // pred_fallthru
      _
    // Predicated region
    $region38: #{tpu_custom_call.1} parent=1 // pred_check
      _
    $region39: #{tpu_custom_call.1} parent=1 // pred_check_branch
      %97 = sbr.rel (0) target = $region41
    $region40: #{tpu_custom_call.1} parent=1 // pred_region
      %98 = dma.done [#allocation5], 256
    $region41: #{tpu_custom_call.1} parent=1 // pred_fallthru
      _
    // Predicated region
    $region42: #{tpu_custom_call.1} parent=1 // pred_check
      _
    $region43: #{tpu_custom_call.1} parent=1 // pred_check_branch
      %100 = sbr.rel (0) target = $region45
    $region44: #{tpu_custom_call.1} parent=1 // pred_region
      %101 = dma.done [#allocation8], 384
    $region45: #{tpu_custom_call.1} parent=1 // pred_fallthru
      _
    // Predicated region
    $region46: #{tpu_custom_call.1} parent=1 // pred_check
      _
    $region47: #{tpu_custom_call.1} parent=1 // pred_check_branch
      %103 = sbr.rel (0) target = $region49
    $region48: #{tpu_custom_call.1} parent=1 // pred_region
      %104 = dma.done [#allocation8], 128
    $region49: #{tpu_custom_call.1} parent=1 // pred_fallthru
      _
    // Predicated region
    $region50: #{tpu_custom_call.1} parent=1 // pred_check
      _
    $region51: #{tpu_custom_call.1} parent=1 // pred_check_branch
      %106 = sbr.rel (0) target = $region53
    $region52: #{tpu_custom_call.1} parent=1 // pred_region
      %107 = dma.done [#allocation11], 128
    $region53: #{tpu_custom_call.1} parent=1 // pred_fallthru
      _
    // Predicated region
    $region54: #{tpu_custom_call.1} parent=1 // pred_check
      _
    $region55: #{tpu_custom_call.1} parent=1 // pred_check_branch
      %109 = sbr.rel (0) target = $region57
    $region56: #{tpu_custom_call.1} parent=1 // pred_region
      %110 = dma.done [#allocation11], 256
    $region57: #{tpu_custom_call.1} parent=1 // pred_fallthru
      _
    // Predicated region
    $region58: #{tpu_custom_call.1} parent=1 // pred_check
      _
    $region59: #{tpu_custom_call.1} parent=1 // pred_check_branch
      %112 = sbr.rel (0) target = $region61
    $region60: #{tpu_custom_call.1} parent=1 // pred_region
      %113 = dma.done [#allocation14], 256
    $region61: #{tpu_custom_call.1} parent=1 // pred_fallthru
      _
    %p114 = scmp.eq.s32.totalorder 0, 0
    // Predicated region
    $region62: #{tpu_custom_call.1} parent=1 // pred_check
      %p115 = pneg %p114
    $region63: #{tpu_custom_call.1} parent=1 // pred_check_branch
      %117 = sbr.rel (%p115) target = $region65
    $region64: #{tpu_custom_call.1} parent=1 // pred_region
      %118 = vst [vmem:[#allocation2] sm:$0x1] 0.0
      %119 = vst [vmem:[#allocation3] sm:$0x1] 0.0
      %120 = vst [vmem:[#allocation15] sm:$0x1] 0.0
      %121 = vst [vmem:[#allocation16] sm:$0x1] 0.0
    $region65: #{tpu_custom_call.1} parent=1 // pred_fallthru
      _
    %v122 = vld [vmem:[%s2] sm:$0x1]
    %v123 = vld [vmem:[#allocation4] sm:$0xff]
    %v124 = vld [vmem:[#allocation4 + $0x8] sm:$0xff]
    %v125 = vld [vmem:[#allocation7] sm:$0xff]
    %v126 = vld [vmem:[#allocation7 + $0x8] sm:$0xff]
    %v127 = vld [vmem:[#allocation7 + $0x10] sm:$0xff]
    %vm128 = vcmask 195584
    %v130 = vsel %vm128, %v123, 0
    %v133 = vsel %vm128, %v124, 0
    %135 = vmatprep.subr.mxu0 0.0
    %136 = vmatpush1.msra.mxu0 0.0
    %137 = vmatprep.subr.mxu0 0.0
    %138 = vmatpush1.msra.mxu0 0.0
    %139 = vmatprep.subr.mxu0 0.0
    %140 = vmatpush1.msra.mxu0 0.0
    %141 = vmatprep.subr.mxu0 0.0
    %142 = vmatpush1.msra.mxu0 0.0
    %143 = vmatprep.subr.mxu0 0.0
    %144 = vmatpush1.msra.mxu0 0.0
    %145 = vmatprep.subr.mxu0 0.0
    %146 = vmatpush1.msra.mxu0 0.0
    %147 = vmatprep.subr.mxu0 0.0
    %148 = vmatpush1.msra.mxu0 0.0
    %149 = vmatprep.subr.mxu0 0.0
    %150 = vmatpush1.msra.mxu0 0.0
    %151 = vmatprep.subr.mxu0 0.0
    %152 = vmatpush1.msra.mxu0 0.0
    %153 = vmatprep.subr.mxu0 0.0
    %154 = vmatpush1.msra.mxu0 0.0
    %155 = vmatprep.subr.mxu0 0.0
    %156 = vmatpush1.msra.mxu0 0.0
    %157 = vmatprep.subr.mxu0 0.0
    %158 = vmatpush1.msra.mxu0 0.0
    %159 = vmatprep.subr.mxu0 0.0
    %160 = vmatpush1.msra.mxu0 0.0
    %161 = vmatprep.subr.mxu0 0.0
    %162 = vmatpush1.msra.mxu0 %v127
    %163 = vmatprep.subr.mxu0 0.0
    %164 = vmatpush1.msra.mxu0 %v126
    %165 = vmatprep.subr.mxu0 0.0
    %166 = vmatpush1.msra.mxu0 %v125
    %167 = vmatprep.subr.mxu0 0.0
    %168 = vmatpush2.msra.mxu0 0.0
    %169 = vmatprep.subr.mxu0 0.0
    %170 = vmatpush2.msra.mxu0 0.0
    %171 = vmatprep.subr.mxu0 0.0
    %172 = vmatpush2.msra.mxu0 0.0
    %173 = vmatprep.subr.mxu0 0.0
    %174 = vmatpush2.msra.mxu0 0.0
    %175 = vmatprep.subr.mxu0 0.0
    %176 = vmatpush2.msra.mxu0 0.0
    %177 = vmatprep.subr.mxu0 0.0
    %178 = vmatpush2.msra.mxu0 0.0
    %179 = vmatprep.subr.mxu0 0.0
    %180 = vmatpush2.msra.mxu0 0.0
    %181 = vmatprep.subr.mxu0 0.0
    %182 = vmatpush2.msra.mxu0 0.0
    %183 = vmatprep.subr.mxu0 0.0
    %184 = vmatpush2.msra.mxu0 0.0
    %185 = vmatprep.subr.mxu0 0.0
    %186 = vmatpush2.msra.mxu0 0.0
    %187 = vmatprep.subr.mxu0 0.0
    %188 = vmatpush2.msra.mxu0 0.0
    %189 = vmatprep.subr.mxu0 0.0
    %190 = vmatpush2.msra.mxu0 0.0
    %191 = vmatprep.subr.mxu0 0.0
    %192 = vmatpush2.msra.mxu0 0.0
    %193 = vmatprep.subr.mxu0 0.0
    %194 = vmatpush2.msra.mxu0 0.0
    %195 = vmatprep.subr.mxu0 0.0
    %196 = vmatpush2.msra.mxu0 0.0
    %197 = vmatprep.subr.mxu0 0.0
    %198 = vmatpush2.msra.mxu0 0.0
    %199 = vmatprep.mubr.f32.mxu0 0.0
    %200 = vmatmul.mubr.f32.gmra.mxu0 %v130
    %v201 = vpop.f32.mrf.mxu0
    %v202 = vadd.f32 0.0, %v201
    %v203 = vpop.f32.mrf.mxu0
    %204 = vmatprep.mubr.f32.mxu0 0.0
    %205 = vmatmul.mubr.f32.gmra.mxu0 %v133
    %v206 = vpop.f32.mrf.mxu0
    %v207 = vadd.f32 0.0, %v206
    %v208 = vpop.f32.mrf.mxu0
    %209 = vdwg.mxu0
    %v210 = vmul.f32 %v202, 1.442695
    %v211 = vpow.pop %v210
    %v212 = vmul.f32 %v207, 1.442695
    %v213 = vpow.pop %v212
    %v214 = vld [vmem:[#allocation2] sm:$0x1]
    %v215 = vadd.f32 %v211, %v213
    %v216 = vrot.slane %v215, 4
    %v217 = vadd.f32 %v215, %v216
    %v218 = vrot.slane %v217, 2
    %v219 = vadd.f32 %v217, %v218
    %v220 = vrot.slane %v219, 1
    %v221 = vadd.f32 %v219, %v220
    %v222 = vmul.f32 %v122, %v221
    %v223 = vadd.f32 %v214, %v222
    %224 = vst [vmem:[#allocation2] sm:$0x1] %v223
    %v225 = vld [vmem:[#allocation12] sm:$0xf]
    %v226 = vld [vmem:[#allocation12 + $0x4] sm:$0xf]
    %v227 = vld [vmem:[#allocation12 + $0x8] sm:$0xf]
    %v228 = vld [vmem:[#allocation12 + $0xc] sm:$0xf]
    %v229 = vld [vmem:[#allocation13] sm:$0xf]
    %v230 = vld [vmem:[#allocation13 + $0x4] sm:$0xf]
    %v231 = vld [vmem:[#allocation13 + $0x8] sm:$0xf]
    %v232 = vld [vmem:[#allocation13 + $0xc] sm:$0xf]
    %v233 = vld [vmem:[%s7] sm:$0xf]
    %v234 = vld [vmem:[%s8] sm:$0xf]
    %v237 = vunpack.c.l.s4 1966171168
    %v238 = vunpack.c.0.s8 %v237
    %v239 = vlaneseq
    %v240 = vshrl.u32 %v239, 7
    %v241 = vsub.s32 %v238, %v240
    %v242 = vrot.slane %v225, %v241
    %v243 = vcombine.high %v242, %v242
    %v245 = vunpack.c.l.s4 1966171168
    %v246 = vunpack.c.0.s8 %v245
    %v247 = vlaneseq
    %v248 = vshrl.u32 %v247, 7
    %v249 = vsub.s32 %v246, %v248
    %v250 = vrot.slane %v242, %v249
    %v252 = vunpack.c.l.s4 1966171168
    %v253 = vunpack.c.0.s8 %v252
    %v254 = vlaneseq
    %v255 = vshrl.u32 %v254, 7
    %v256 = vsub.s32 %v253, %v255
    %v257 = vrot.slane %v243, %v256
    %v258 = vcombine.high %v250, %v250
    %v259 = vcombine.high %v257, %v257
    %v260 = vlaneseq
    %v261 = vshrl.u32 %v260, 7
    %v262 = vsub.s32 0, %v261
    %v263 = vrot.slane %v250, %v262
    %v264 = vlaneseq
    %v265 = vshrl.u32 %v264, 7
    %v266 = vsub.s32 0, %v265
    %v267 = vrot.slane %v257, %v266
    %v268 = vlaneseq
    %v269 = vshrl.u32 %v268, 7
    %v270 = vsub.s32 0, %v269
    %v271 = vrot.slane %v258, %v270
    %v272 = vlaneseq
    %v273 = vshrl.u32 %v272, 7
    %v274 = vsub.s32 0, %v273
    %v275 = vrot.slane %v259, %v274
    %v280 = vmul.f32 %v263, %v225
    %v281 = vmul.f32 %v267, %v225
    %v282 = vmul.f32 %v271, %v225
    %v283 = vmul.f32 %v275, %v225
    %v286 = vunpack.c.l.s4 1966171168
    %v287 = vunpack.c.0.s8 %v286
    %v288 = vlaneseq
    %v289 = vshrl.u32 %v288, 7
    %v290 = vsub.s32 %v287, %v289
    %v291 = vrot.slane %v226, %v290
    %v292 = vcombine.high %v291, %v291
    %v294 = vunpack.c.l.s4 1966171168
    %v295 = vunpack.c.0.s8 %v294
    %v296 = vlaneseq
    %v297 = vshrl.u32 %v296, 7
    %v298 = vsub.s32 %v295, %v297
    %v299 = vrot.slane %v291, %v298
    %v301 = vunpack.c.l.s4 1966171168
    %v302 = vunpack.c.0.s8 %v301
    %v303 = vlaneseq
    %v304 = vshrl.u32 %v303, 7
    %v305 = vsub.s32 %v302, %v304
    %v306 = vrot.slane %v292, %v305
    %v307 = vcombine.high %v299, %v299
    %v308 = vcombine.high %v306, %v306
    %v309 = vlaneseq
    %v310 = vshrl.u32 %v309, 7
    %v311 = vsub.s32 0, %v310
    %v312 = vrot.slane %v299, %v311
    %v313 = vlaneseq
    %v314 = vshrl.u32 %v313, 7
    %v315 = vsub.s32 0, %v314
    %v316 = vrot.slane %v306, %v315
    %v317 = vlaneseq
    %v318 = vshrl.u32 %v317, 7
    %v319 = vsub.s32 0, %v318
    %v320 = vrot.slane %v307, %v319
    %v321 = vlaneseq
    %v322 = vshrl.u32 %v321, 7
    %v323 = vsub.s32 0, %v322
    %v324 = vrot.slane %v308, %v323
    %v329 = vmul.f32 %v312, %v226
    %v330 = vmul.f32 %v316, %v226
    %v331 = vmul.f32 %v320, %v226
    %v332 = vmul.f32 %v324, %v226
    %v333 = vadd.f32 %v280, %v329
    %v334 = vadd.f32 %v281, %v330
    %v335 = vadd.f32 %v282, %v331
    %v336 = vadd.f32 %v283, %v332
    %v339 = vunpack.c.l.s4 1966171168
    %v340 = vunpack.c.0.s8 %v339
    %v341 = vlaneseq
    %v342 = vshrl.u32 %v341, 7
    %v343 = vsub.s32 %v340, %v342
    %v344 = vrot.slane %v227, %v343
    %v345 = vcombine.high %v344, %v344
    %v347 = vunpack.c.l.s4 1966171168
    %v348 = vunpack.c.0.s8 %v347
    %v349 = vlaneseq
    %v350 = vshrl.u32 %v349, 7
    %v351 = vsub.s32 %v348, %v350
    %v352 = vrot.slane %v344, %v351
    %v354 = vunpack.c.l.s4 1966171168
    %v355 = vunpack.c.0.s8 %v354
    %v356 = vlaneseq
    %v357 = vshrl.u32 %v356, 7
    %v358 = vsub.s32 %v355, %v357
    %v359 = vrot.slane %v345, %v358
    %v360 = vcombine.high %v352, %v352
    %v361 = vcombine.high %v359, %v359
    %v362 = vlaneseq
    %v363 = vshrl.u32 %v362, 7
    %v364 = vsub.s32 0, %v363
    %v365 = vrot.slane %v352, %v364
    %v366 = vlaneseq
    %v367 = vshrl.u32 %v366, 7
    %v368 = vsub.s32 0, %v367
    %v369 = vrot.slane %v359, %v368
    %v370 = vlaneseq
    %v371 = vshrl.u32 %v370, 7
    %v372 = vsub.s32 0, %v371
    %v373 = vrot.slane %v360, %v372
    %v374 = vlaneseq
    %v375 = vshrl.u32 %v374, 7
    %v376 = vsub.s32 0, %v375
    %v377 = vrot.slane %v361, %v376
    %v382 = vmul.f32 %v365, %v227
    %v383 = vmul.f32 %v369, %v227
    %v384 = vmul.f32 %v373, %v227
    %v385 = vmul.f32 %v377, %v227
    %v386 = vadd.f32 %v333, %v382
    %v387 = vadd.f32 %v334, %v383
    %v388 = vadd.f32 %v335, %v384
    %v389 = vadd.f32 %v336, %v385
    %v392 = vunpack.c.l.s4 1966171168
    %v393 = vunpack.c.0.s8 %v392
    %v394 = vlaneseq
    %v395 = vshrl.u32 %v394, 7
    %v396 = vsub.s32 %v393, %v395
    %v397 = vrot.slane %v228, %v396
    %v398 = vcombine.high %v397, %v397
    %v400 = vunpack.c.l.s4 1966171168
    %v401 = vunpack.c.0.s8 %v400
    %v402 = vlaneseq
    %v403 = vshrl.u32 %v402, 7
    %v404 = vsub.s32 %v401, %v403
    %v405 = vrot.slane %v397, %v404
    %v407 = vunpack.c.l.s4 1966171168
    %v408 = vunpack.c.0.s8 %v407
    %v409 = vlaneseq
    %v410 = vshrl.u32 %v409, 7
    %v411 = vsub.s32 %v408, %v410
    %v412 = vrot.slane %v398, %v411
    %v413 = vcombine.high %v405, %v405
    %v414 = vcombine.high %v412, %v412
    %v415 = vlaneseq
    %v416 = vshrl.u32 %v415, 7
    %v417 = vsub.s32 0, %v416
    %v418 = vrot.slane %v405, %v417
    %v419 = vlaneseq
    %v420 = vshrl.u32 %v419, 7
    %v421 = vsub.s32 0, %v420
    %v422 = vrot.slane %v412, %v421
    %v423 = vlaneseq
    %v424 = vshrl.u32 %v423, 7
    %v425 = vsub.s32 0, %v424
    %v426 = vrot.slane %v413, %v425
    %v427 = vlaneseq
    %v428 = vshrl.u32 %v427, 7
    %v429 = vsub.s32 0, %v428
    %v430 = vrot.slane %v414, %v429
    %v435 = vmul.f32 %v418, %v228
    %v436 = vmul.f32 %v422, %v228
    %v437 = vmul.f32 %v426, %v228
    %v438 = vmul.f32 %v430, %v228
    %v439 = vadd.f32 %v386, %v435
    %v440 = vadd.f32 %v387, %v436
    %v441 = vadd.f32 %v388, %v437
    %v442 = vadd.f32 %v389, %v438
    %v445 = vunpack.c.l.s4 1966171168
    %v446 = vunpack.c.0.s8 %v445
    %v447 = vlaneseq
    %v448 = vshrl.u32 %v447, 7
    %v449 = vsub.s32 %v446, %v448
    %v450 = vrot.slane %v233, %v449
    %v451 = vcombine.high %v450, %v450
    %v453 = vunpack.c.l.s4 1966171168
    %v454 = vunpack.c.0.s8 %v453
    %v455 = vlaneseq
    %v456 = vshrl.u32 %v455, 7
    %v457 = vsub.s32 %v454, %v456
    %v458 = vrot.slane %v450, %v457
    %v460 = vunpack.c.l.s4 1966171168
    %v461 = vunpack.c.0.s8 %v460
    %v462 = vlaneseq
    %v463 = vshrl.u32 %v462, 7
    %v464 = vsub.s32 %v461, %v463
    %v465 = vrot.slane %v451, %v464
    %v466 = vcombine.high %v458, %v458
    %v467 = vcombine.high %v465, %v465
    %v468 = vlaneseq
    %v469 = vshrl.u32 %v468, 7
    %v470 = vsub.s32 0, %v469
    %v471 = vrot.slane %v458, %v470
    %v472 = vlaneseq
    %v473 = vshrl.u32 %v472, 7
    %v474 = vsub.s32 0, %v473
    %v475 = vrot.slane %v465, %v474
    %v476 = vlaneseq
    %v477 = vshrl.u32 %v476, 7
    %v478 = vsub.s32 0, %v477
    %v479 = vrot.slane %v466, %v478
    %v480 = vlaneseq
    %v481 = vshrl.u32 %v480, 7
    %v482 = vsub.s32 0, %v481
    %v483 = vrot.slane %v467, %v482
    %v488 = vmul.f32 %v471, %v233
    %v489 = vmul.f32 %v475, %v233
    %v490 = vmul.f32 %v479, %v233
    %v491 = vmul.f32 %v483, %v233
    %v492 = vadd.f32 %v229, %v488
    %v493 = vadd.f32 %v230, %v489
    %v494 = vadd.f32 %v231, %v490
    %v495 = vadd.f32 %v232, %v491
    %v496 = vmul.f32 %v439, %v492
    %v497 = vmul.f32 %v440, %v493
    %v498 = vmul.f32 %v441, %v494
    %v499 = vmul.f32 %v442, %v495
    %vm500 = vcmask 1043456
    %v501 = vsel %vm500, %v496, 0.0
    %v502 = vsel %vm500, %v497, 0.0
    %v503 = vadd.f32 %v501, %v502
    %v504 = vsel %vm500, %v498, 0.0
    %v505 = vadd.f32 %v503, %v504
    %v506 = vsel %vm500, %v499, 0.0
    %v507 = vadd.f32 %v505, %v506
    %v510 = vunpack.c.l.s4 1966171168
    %v511 = vunpack.c.0.s8 %v510
    %v512 = vlaneseq
    %v513 = vshrl.u32 %v512, 7
    %v514 = vsub.s32 %v511, %v513
    %v515 = vrot.slane %v234, %v514
    %v516 = vcombine.high %v515, %v515
    %v518 = vunpack.c.l.s4 1966171168
    %v519 = vunpack.c.0.s8 %v518
    %v520 = vlaneseq
    %v521 = vshrl.u32 %v520, 7
    %v522 = vsub.s32 %v519, %v521
    %v523 = vrot.slane %v515, %v522
    %v525 = vunpack.c.l.s4 1966171168
    %v526 = vunpack.c.0.s8 %v525
    %v527 = vlaneseq
    %v528 = vshrl.u32 %v527, 7
    %v529 = vsub.s32 %v526, %v528
    %v530 = vrot.slane %v516, %v529
    %v531 = vcombine.high %v523, %v523
    %v532 = vcombine.high %v530, %v530
    %v533 = vlaneseq
    %v534 = vshrl.u32 %v533, 7
    %v535 = vsub.s32 0, %v534
    %v536 = vrot.slane %v523, %v535
    %v537 = vlaneseq
    %v538 = vshrl.u32 %v537, 7
    %v539 = vsub.s32 0, %v538
    %v540 = vrot.slane %v530, %v539
    %v541 = vlaneseq
    %v542 = vshrl.u32 %v541, 7
    %v543 = vsub.s32 0, %v542
    %v544 = vrot.slane %v531, %v543
    %v545 = vlaneseq
    %v546 = vshrl.u32 %v545, 7
    %v547 = vsub.s32 0, %v546
    %v548 = vrot.slane %v532, %v547
    %v553 = vmul.f32 %v225, %v536
    %v554 = vmul.f32 %v226, %v540
    %v555 = vmul.f32 %v227, %v544
    %v556 = vmul.f32 %v228, %v548
    %v557 = vsel %vm500, %v553, 0.0
    %v558 = vsel %vm500, %v554, 0.0
    %v559 = vadd.f32 %v557, %v558
    %v560 = vsel %vm500, %v555, 0.0
    %v561 = vadd.f32 %v559, %v560
    %v562 = vsel %vm500, %v556, 0.0
    %v563 = vadd.f32 %v561, %v562
    %v564 = vmul.f32 %v233, %v563
    %v565 = vmul.f32 %v564, 2.0
    %v566 = vsub.f32 %v507, %v565
    %v567 = vmul.f32 %v234, %v234
    %v568 = vadd.f32 %v566, %v567
    %v569 = vsel %vm500, %v568, 0.0
    %v570 = vrot.slane %v569, 4
    %v571 = vadd.f32 %v569, %v570
    %v572 = vrot.slane %v571, 2
    %v573 = vadd.f32 %v571, %v572
    %v574 = vrot.slane %v573, 1
    %v575 = vadd.f32 %v573, %v574
    %v576 = vld [vmem:[#allocation3] sm:$0x1]
    %v577 = vmul.f32 %v122, 0.5
    %v578 = vmul.f32 %v577, %v575
    %v579 = vadd.f32 %v576, %v578
    %580 = vst [vmem:[#allocation3] sm:$0x1] %v579
    // Predicated region
    $region66: #{tpu_custom_call.1} parent=1 // pred_check
      %p581 = pneg %p114
    $region67: #{tpu_custom_call.1} parent=1 // pred_check_branch
      %583 = sbr.rel (%p581) target = $region69
    $region68: #{tpu_custom_call.1} parent=1 // pred_region
      %v584 = vld [vmem:[#allocation9] sm:$0x1f]
      %v585 = vld [vmem:[#allocation10] sm:$0x1f]
      %v586 = vmul.f32 %v584, %v585
      %vm587 = vcmask 1044480
      %v588 = vsel %vm587, %v586, 0.0
      %589 = vadd.xlane.f32.xlu0 %v588
      %v590 = vpop.xlane.xlu0 %589
      %v591 = vrot.slane %v590, 4
      %v592 = vadd.f32 %v590, %v591
      %v593 = vrot.slane %v592, 2
      %v594 = vadd.f32 %v592, %v593
      %v595 = vrot.slane %v594, 1
      %v596 = vadd.f32 %v594, %v595
      %s597 = vtos %v596
      %v598 = vld [vmem:[#allocation2] sm:$0x1]
      %vm599 = vcmask 1040384
      %v600 = vsel %vm599, %v598, 0.0
      %601 = vadd.xlane.f32.xlu0 %v600
      %v602 = vpop.xlane.xlu0 %601
      %v603 = vrot.slane %v602, 4
      %v604 = vadd.f32 %v602, %v603
      %v605 = vrot.slane %v604, 2
      %v606 = vadd.f32 %v604, %v605
      %v607 = vrot.slane %v606, 1
      %v608 = vadd.f32 %v606, %v607
      %s609 = vtos %v608
      %s610 = ssub.f32 %s597, %s609
      %v611 = vld [vmem:[#allocation3] sm:$0x1]
      %v612 = vsel %vm599, %v611, 0.0
      %613 = vadd.xlane.f32.xlu0 %v612
      %v614 = vpop.xlane.xlu0 %613
      %v615 = vrot.slane %v614, 4
      %v616 = vadd.f32 %v614, %v615
      %v617 = vrot.slane %v616, 2
      %v618 = vadd.f32 %v616, %v617
      %v619 = vrot.slane %v618, 1
      %v620 = vadd.f32 %v618, %v619
      %s621 = vtos %v620
      %v622 = vstv %s610
      %623 = vst [vmem:[#allocation15] sm:$0x1] %v622
      %v624 = vstv %s621
      %625 = vst [vmem:[#allocation16] sm:$0x1] %v624
    $region69: #{tpu_custom_call.1} parent=1 // pred_fallthru
      _
    // Predicated region
    $region70: #{tpu_custom_call.1} parent=1 // pred_check
      _
    $region71: #{tpu_custom_call.1} parent=1 // pred_check_branch
      %627 = sbr.rel (0) target = $region73
    $region72: #{tpu_custom_call.1} parent=1 // pred_region
      %s629 = ssub.s32 16, 16
      %630 = vsyncadd [#allocation6], %s629
      %s632 = sshll.u32 [#allocation15], 4
      %s633 = int_to_ptr.vmem [resolvable:$true] %s632
      %635 = dma.vmem_to_hbm [thread:$0]  %s633, 16, %s9, [#allocation6]
    $region73: #{tpu_custom_call.1} parent=1 // pred_fallthru
      _
    // Predicated region
    $region74: #{tpu_custom_call.1} parent=1 // pred_check
      _
    $region75: #{tpu_custom_call.1} parent=1 // pred_check_branch
      %637 = sbr.rel (0) target = $region77
    $region76: #{tpu_custom_call.1} parent=1 // pred_region
      %s639 = ssub.s32 16, 16
      %640 = vsyncadd [#allocation17], %s639
      %s642 = sshll.u32 [#allocation16], 4
      %s643 = int_to_ptr.vmem [resolvable:$true] %s642
      %645 = dma.vmem_to_hbm [thread:$0]  %s643, 16, %s10, [#allocation17]
    $region77: #{tpu_custom_call.1} parent=1 // pred_fallthru
      _
    // Predicated region
    $region78: #{tpu_custom_call.1} parent=1 // pred_check
      _
    $region79: #{tpu_custom_call.1} parent=1 // pred_check_branch
      %647 = sbr.rel (0) target = $region81
    $region80: #{tpu_custom_call.1} parent=1 // pred_region
      %648 = dma.done [#allocation6], 16
    $region81: #{tpu_custom_call.1} parent=1 // pred_fallthru
      _
    // Predicated region
    $region82: #{tpu_custom_call.1} parent=1 // pred_check
      _
    $region83: #{tpu_custom_call.1} parent=1 // pred_check_branch
      %650 = sbr.rel (0) target = $region85
    $region84: #{tpu_custom_call.1} parent=1 // pred_region
      %651 = dma.done [#allocation17], 16
    $region85: #{tpu_custom_call.1} parent=1 // pred_fallthru
      _
    %652 = vsyncpa [#allocation5], 1
    %653 = vsyncpa [#allocation8], 1
    %654 = vsyncpa [#allocation11], 1
    %655 = vsyncpa [#allocation14], 1
    %656 = vsyncpa [#allocation6], 1
    %657 = vsyncpa [#allocation17], 1

</llo_original>
